<compile_context>
chip_gen: v7x
topology: tpu7x:2x2x1
jax: 0.10.0
libtpu: 0.0.40
codegen_flags: <defaults>
</compile_context>

<pallas_src>
import functools

import jax
import jax.numpy as jnp
from jax import lax
from jax.experimental import pallas as pl
from jax.experimental.pallas import tpu as pltpu


def _round_up(x, m):
    return ((x + m - 1) // m) * m


def _apply_gamma(u, gamma):
    """(1 - pt) ** gamma, with small-integer gammas as repeated VPU multiplies."""
    g = float(gamma)
    if g.is_integer() and 0 <= g <= 8:
        gi = int(g)
        if gi == 0:
            return jnp.ones_like(u)
        out = u
        for _ in range(gi - 1):
            out = out * u
        return out
    # Non-integer gamma: pow fallback (EUP log+exp). pt can exceed 1.0 by a few ulps,
    # so clamp the base to avoid NaN from a negative base.
    return jnp.maximum(u, 0.0) ** g


def _focal_loss_kernel(x_ref, y_ref, o_ref, *, gamma, n_valid, block_rows):
    # x_ref: (TN, C) logits tile in VMEM; y_ref: (TN, 1) int32 labels tile in VMEM
    # o_ref: (1, 1) float32 per-block partial sum in SMEM
    i = pl.program_id(0)

    x = x_ref[...]                                # (TN, C), input dtype (f32 or bf16)
    y = y_ref[...]                                # (TN, 1) int32

    # Numerically stable log-softmax pieces over the last dim (lanes).
    # Row-max and subtraction in the input dtype (native bf16 VPU on v6e/v7x);
    # cast to f32 only for exp / accumulation.
    m = jnp.max(x, axis=-1, keepdims=True)        # (TN, 1)
    shifted = (x - m).astype(jnp.float32)         # (TN, C) f32
    lse = jnp.log(jnp.sum(jnp.exp(shifted), axis=-1, keepdims=True))  # (TN, 1)

    # Gather shifted[r, y_r] with a single where-select (no one-hot cast+mul):
    #   log_pt = sum(where(c == y_r, shifted, 0)) - lse
    col_ids = lax.broadcasted_iota(jnp.int32, shifted.shape, 1)            # (TN, C)
    sel = jnp.sum(jnp.where(col_ids == y, shifted, 0.0),
                  axis=-1, keepdims=True)                                  # (TN, 1)
    log_pt = sel - lse                            # (TN, 1)

    ce = -log_pt                                  # NLLLoss, no class weights
    pt = jnp.exp(log_pt)
    focal_term = _apply_gamma(1.0 - pt, gamma)    # (TN, 1)
    per_row = focal_term * ce                     # (TN, 1)

    # Mask padded / ragged tail rows (global row index >= true N).  Must be a
    # where-select (not a 0/1 multiply) so NaN/inf from garbage rows of the
    # clipped last-block DMA cannot propagate into the partial sum.
    row_ids = i * block_rows + lax.broadcasted_iota(jnp.int32, per_row.shape, 0)
    per_row = jnp.where(row_ids < n_valid, per_row, 0.0)

    o_ref[0, 0] = jnp.sum(per_row)


def focal_loss(inputs, targets, gamma=2, alpha=None, block_rows=None):
    """inputs: (N, C) float logits (f32 or bf16), targets: (N,) int labels -> scalar f32."""
    if alpha is not None:
        # TODO(synk): per-class NLLLoss weights (alpha) not wired in; module default is None.
        raise NotImplementedError("alpha (class weights) is not supported")

    n, c = inputs.shape
    itemsize = jnp.dtype(inputs.dtype).itemsize

    if block_rows is None:
        # Per-row VMEM cost for one grid step:
        #   2x double-buffered logits row            : 2 * C * itemsize
        #   2x double-buffered int32 label row       : 2 * 128 * 4   (lane-padded to 128)
        #   ~3 f32 (TN, C) compiler temporaries      : 3 * C * 4     (shifted / exp / select)
        per_row_vmem = 2 * (c * itemsize + 128 * 4) + 3 * c * 4
        vmem_step_budget = 24 * 1024 * 1024        # ~half of the 48 MiB limit; safe on v7x (64 MiB)
        block_rows = max(8, vmem_step_budget // per_row_vmem)
        block_rows = min(block_rows, 16384)
        # Megacore balance (v7x): keep >= ~8 row blocks whenever N allows it.
        block_rows = min(block_rows, _round_up(pl.cdiv(n, 8), 8))
    block_rows = max(8, (int(block_rows) // 8) * 8)            # multiple of 8 sublanes

    num_blocks = pl.cdiv(n, block_rows)                        # ragged last block handled in-kernel
    y = targets.astype(jnp.int32).reshape(n, 1)                # no padding of x or y

    partial = pl.pallas_call(
        functools.partial(
            _focal_loss_kernel, gamma=gamma, n_valid=n, block_rows=block_rows
        ),
        out_shape=jax.ShapeDtypeStruct((num_blocks, 1), jnp.float32),
        grid=(num_blocks,),
        in_specs=[
            pl.BlockSpec((block_rows, c), lambda i: (i, 0)),
            pl.BlockSpec((block_rows, 1), lambda i: (i, 0)),
        ],
        out_specs=pl.BlockSpec(
            (1, 1), lambda i: (i, 0), memory_space=pltpu.MemorySpace.SMEM
        ),
        compiler_params=pltpu.CompilerParams(
            dimension_semantics=("parallel",),          # row blocks are independent
            vmem_limit_bytes=48 * 1024 * 1024,
        ),
    )(inputs, y)

    # Final reduction: sum of per-block partials, divided by the true N exactly once.
    return jnp.sum(partial) / jnp.float32(n)


def _focal_loss_ref(inputs, targets, gamma=2):
    # Pure-JAX reference for a quick sanity check.
    log_p = jax.nn.log_softmax(inputs.astype(jnp.float32), axis=-1)
    log_pt = jnp.take_along_axis(
        log_p, targets[:, None].astype(jnp.int32), axis=-1
    )[:, 0]
    ce = -log_pt
    pt = jnp.exp(log_pt)
    return jnp.mean(((1.0 - pt) ** gamma) * ce)


if __name__ == "__main__":
    key = jax.random.PRNGKey(0)
    k1, k2, k3, k4 = jax.random.split(key, 4)

    # Small shapes consistent with the module: batch of 8 samples, 32 classes.
    N, C = 8, 32
    x = jax.random.normal(k1, (N, C), dtype=jnp.float32)
    y = jax.random.randint(k2, (N,), 0, C, dtype=jnp.int32)

    loss = focal_loss(x, y, gamma=2)
    jax.block_until_ready(loss)
    ref = _focal_loss_ref(x, y, gamma=2)
    assert jnp.allclose(loss, ref, atol=1e-5, rtol=1e-5), (loss, ref)

    # Exercise the multi-block + ragged-last-block (no-padding) path with a forced
    # small block size: 103 rows, block_rows=16 -> 7 blocks, last block masked.
    N2, C2 = 103, 32
    x2 = jax.random.normal(k3, (N2, C2), dtype=jnp.float32)
    y2 = jax.random.randint(k4, (N2,), 0, C2, dtype=jnp.int32)
    loss2 = focal_loss(x2, y2, gamma=2, block_rows=16)
    jax.block_until_ready(loss2)
    ref2 = _focal_loss_ref(x2, y2, gamma=2)
    assert jnp.allclose(loss2, ref2, atol=1e-5, rtol=1e-5), (loss2, ref2)

    print("KERNEL_OK")
</pallas_src>

<mosaic_0001>
module attributes {stable_mosaic.version = 11 : i64} {
  func.func @_focal_loss_kernel(%arg0: i32, %arg1: memref<8x32xf32, #tpu.memory_space<vmem>>, %arg2: memref<8x1xi32, #tpu.memory_space<vmem>>, %arg3: memref<1x1xf32, #tpu.memory_space<smem>>) attributes {dimension_semantics = [#tpu.dimension_semantics<parallel>], iteration_bounds = array<i64: 1>, scalar_prefetch = 0 : i64, scratch_operands = 0 : i64, tpu.core_type = #tpu.core_type<tc>, window_params = [{transform_indices = @transform_0, window_bounds = array<i64: 8, 32>}, {transform_indices = @transform_1, window_bounds = array<i64: 8, 1>}, {transform_indices = @transform_2, window_bounds = array<i64: 1, 1>}]} {
    %c0 = arith.constant 0 : index
    %c0_0 = arith.constant 0 : index
    %0 = vector.load %arg1[%c0, %c0_0] : memref<8x32xf32, #tpu.memory_space<vmem>>, vector<8x32xf32>
    %c0_1 = arith.constant 0 : index
    %c0_2 = arith.constant 0 : index
    %1 = vector.load %arg2[%c0_1, %c0_2] : memref<8x1xi32, #tpu.memory_space<vmem>>, vector<8x1xi32>
    %cst = arith.constant dense<0xFF800000> : vector<8xf32>
    %2 = vector.multi_reduction <maximumf>, %0, %cst [1] : vector<8x32xf32> to vector<8xf32>
    %3 = vector.shape_cast %2 : vector<8xf32> to vector<8x1xf32>
    %4 = vector.broadcast %3 : vector<8x1xf32> to vector<8x32xf32>
    %5 = arith.subf %0, %4 : vector<8x32xf32>
    %6 = math.exp %5 : vector<8x32xf32>
    %cst_3 = arith.constant dense<0.000000e+00> : vector<8xf32>
    %7 = vector.multi_reduction <add>, %6, %cst_3 [1] : vector<8x32xf32> to vector<8xf32>
    %8 = vector.shape_cast %7 : vector<8xf32> to vector<8x1xf32>
    %9 = math.log %8 : vector<8x1xf32>
    %10 = tpu.iota {dimensions = array<i32: 1>} : vector<8x32xi32>
    %11 = vector.broadcast %1 : vector<8x1xi32> to vector<8x32xi32>
    %12 = arith.cmpi eq, %10, %11 : vector<8x32xi32>
    %cst_4 = arith.constant 0.000000e+00 : f32
    %13 = vector.broadcast %cst_4 : f32 to vector<8x32xf32>
    %14 = arith.select %12, %5, %13 : vector<8x32xi1>, vector<8x32xf32>
    %cst_5 = arith.constant dense<0.000000e+00> : vector<8xf32>
    %15 = vector.multi_reduction <add>, %14, %cst_5 [1] : vector<8x32xf32> to vector<8xf32>
    %16 = vector.shape_cast %15 : vector<8xf32> to vector<8x1xf32>
    %17 = arith.subf %16, %9 : vector<8x1xf32>
    %cst_6 = arith.constant 0.000000e+00 : f32
    %18 = vector.broadcast %cst_6 : f32 to vector<8x1xf32>
    %19 = arith.subf %18, %17 : vector<8x1xf32>
    %20 = math.exp %17 : vector<8x1xf32>
    %cst_7 = arith.constant 1.000000e+00 : f32
    %21 = vector.broadcast %cst_7 : f32 to vector<8x1xf32>
    %22 = arith.subf %21, %20 : vector<8x1xf32>
    %23 = arith.mulf %22, %22 : vector<8x1xf32>
    %24 = arith.mulf %23, %19 : vector<8x1xf32>
    %c8_i32 = arith.constant 8 : i32
    %25 = arith.muli %arg0, %c8_i32 : i32
    %26 = tpu.iota {dimensions = array<i32: 0>} : vector<8x1xi32>
    %27 = vector.broadcast %25 : i32 to vector<8x1xi32>
    %28 = arith.addi %27, %26 : vector<8x1xi32>
    %c8_i32_8 = arith.constant 8 : i32
    %29 = vector.broadcast %c8_i32_8 : i32 to vector<8x1xi32>
    %30 = arith.cmpi slt, %28, %29 : vector<8x1xi32>
    %cst_9 = arith.constant 0.000000e+00 : f32
    %31 = vector.broadcast %cst_9 : f32 to vector<8x1xf32>
    %32 = arith.select %30, %24, %31 : vector<8x1xi1>, vector<8x1xf32>
    %33 = vector.shape_cast %32 : vector<8x1xf32> to vector<1x8x1xf32>
    %cst_10 = arith.constant dense<0.000000e+00> : vector<1xf32>
    %34 = vector.multi_reduction <add>, %33, %cst_10 [1, 2] : vector<1x8x1xf32> to vector<1xf32>
    %35 = vector.shape_cast %34 : vector<1xf32> to vector<1x1x1xf32>
    %36 = vector.extract %35[0, 0, 0] : f32 from vector<1x1x1xf32>
    %c0_11 = arith.constant 0 : index
    %c0_12 = arith.constant 0 : index
    %37 = memref.load %arg3[%c0_11, %c0_12] : memref<1x1xf32, #tpu.memory_space<smem>>
    memref.store %36, %arg3[%c0_11, %c0_12] : memref<1x1xf32, #tpu.memory_space<smem>>
    return
  }
  func.func @transform_0(%arg0: i32) -> (i32, i32) {
    %c0_i32 = arith.constant 0 : i32
    %c0_i32_0 = arith.constant 0 : i32
    return %arg0, %c0_i32 : i32, i32
  }
  func.func @transform_1(%arg0: i32) -> (i32, i32) {
    %c0_i32 = arith.constant 0 : i32
    %c0_i32_0 = arith.constant 0 : i32
    return %arg0, %c0_i32 : i32, i32
  }
  func.func @transform_2(%arg0: i32) -> (i32, i32) {
    %c0_i32 = arith.constant 0 : i32
    %c0_i32_0 = arith.constant 0 : i32
    return %arg0, %c0_i32 : i32, i32
  }
}

</mosaic_0001>

<llo_original>
// kernel: tpu_custom_call.1
$region0: #{tpu_custom_call.1}
  #allocation0 [shape = 'u32[]', space=smem, size = 0x4, offset = 0x4, fixed_abs, tag = 'smem constant byte address 0x4 - core index']
  #allocation1 [shape = 'u32[144,128]{1,0:T(1,128)}', space=vmem, size = 0x12000, scoped, tag = 'internal scratch']
  %s0 = inlined_call_operand.vmem [shape: f32[8,32], index: 0, kind: input, shape index: {}]
  %s1 = inlined_call_operand.vmem [shape: s32[8,1], index: 1, kind: input, shape index: {}]
  %s2 = inlined_call_operand.hbm [shape: f32[1,1], index: 2, kind: output, shape index: {}]
  %s3 = sld [smem:[#allocation0]]
  $region18: #{tpu_custom_call.1} parent=0
    _
  %s5 = ssub.s32 1, %s3
  %s6 = scalar_select 0, %s5, %s3
  $region1: #{tpu_custom_call.1} parent=0
    #allocation2 [shape = 'u8[512]{0}', space=smem, size = 0x200, scoped, tag = 'output window, operand 0, single buffered']
    #allocation3 [shape = 's32[1]{0}', space=sflag, size = 0x4, scoped, tag = 'scoped memory for tpu_custom_call.1']
    %7 = vsyncpa [#allocation3], 0
    // Predicated region
    $region2: #{tpu_custom_call.1} parent=1 // pred_check
      _
    $region3: #{tpu_custom_call.1} parent=1 // pred_check_branch
      %9 = sbr.rel (0) target = $region5
    $region4: #{tpu_custom_call.1} parent=1 // pred_region
      _
    $region5: #{tpu_custom_call.1} parent=1 // pred_fallthru
      _
    // Predicated region
    $region6: #{tpu_custom_call.1} parent=1 // pred_check
      _
    $region7: #{tpu_custom_call.1} parent=1 // pred_check_branch
      %11 = sbr.rel (0) target = $region9
    $region8: #{tpu_custom_call.1} parent=1 // pred_region
      _
    $region9: #{tpu_custom_call.1} parent=1 // pred_fallthru
      _
    %v12 = vld [vmem:[%s0] sm:$0xff]
    %v13 = vld [vmem:[%s1] sm:$0xff]
    %vm14 = vcmask 261120
    %v15 = vsel %vm14, %v12, -inf
    %16 = vmax.xlane.f32.xlu0 %v15
    %v17 = vpop.xlane.xlu0 %16
    %v18 = vsub.f32 %v12, %v17
    %v19 = vmul.f32 %v18, 1.442695
    %v20 = vpow.pop %v19
    %v21 = vsel %vm14, %v20, 0.0
    %22 = vadd.xlane.f32.xlu0 %v21
    %v23 = vpop.xlane.xlu0 %22
    %v24 = vlog2.pop %v23
    %v25 = vmul.f32 %v24, 0.6931472
    %v26 = vlaneseq
    %v27 = vand.u32 %v26, 127
    %28 = vset.pattern.permute.xlu0 0
    %29 = vperm.xlu0 %28, %v13
    %v30 = vpop.permute.xlu0 %29
    %vm31 = vcmp.eq.s32.totalorder %v27, %v30
    %v32 = vsel %vm31, %v18, 0.0
    %v33 = vsel %vm14, %v32, 0.0
    %34 = vadd.xlane.f32.xlu0 %v33
    %v35 = vpop.xlane.xlu0 %34
    %v36 = vsub.f32 %v35, %v25
    %v37 = vsub.f32 0.0, %v36
    %v38 = vmul.f32 %v36, 1.442695
    %v39 = vpow.pop %v38
    %v40 = vsub.f32 1.0, %v39
    %v41 = vmul.f32 %v40, %v40
    %v42 = vmul.f32 %v41, %v37
    %s43 = smul.u32 0, 8
    %v44 = vlaneseq
    %v45 = vshrl.u32 %v44, 7
    %v46 = vstv %s43
    %v47 = vadd.s32 %v46, %v45
    %vm48 = vcmp.lt.s32.totalorder %v47, 8
    %v49 = vsel %vm48, %v42, 0.0
    %vm50 = vcmask 7168
    %v51 = vsel %vm50, %v49, 0.0
    %52 = vadd.xlane.f32.xlu0 %v51
    %v53 = vpop.xlane.xlu0 %52
    %v54 = vrot.slane %v53, 4
    %v55 = vadd.f32 %v53, %v54
    %v56 = vrot.slane %v55, 2
    %v57 = vadd.f32 %v55, %v56
    %v58 = vrot.slane %v57, 1
    %v59 = vadd.f32 %v57, %v58
    %s60 = vtos %v59
    %s61 = scalar_lea.smem [#allocation2], 0
    %62 = sst [smem:[%s61]] %s60
    // Predicated region
    $region10: #{tpu_custom_call.1} parent=1 // pred_check
      _
    $region11: #{tpu_custom_call.1} parent=1 // pred_check_branch
      %64 = sbr.rel (0) target = $region13
    $region12: #{tpu_custom_call.1} parent=1 // pred_region
      %s66 = ssub.s32 16, 16
      %67 = vsyncadd [#allocation3], %s66
      %70 = dma.smem_to_hbm [#allocation2], 16, %s2, [#allocation3]
    $region13: #{tpu_custom_call.1} parent=1 // pred_fallthru
      _
    // Predicated region
    $region14: #{tpu_custom_call.1} parent=1 // pred_check
      _
    $region15: #{tpu_custom_call.1} parent=1 // pred_check_branch
      %72 = sbr.rel (0) target = $region17
    $region16: #{tpu_custom_call.1} parent=1 // pred_region
      %73 = dma.done [#allocation3], 16
    $region17: #{tpu_custom_call.1} parent=1 // pred_fallthru
      _
    %74 = sfence
    %75 = vsyncpa [#allocation3], 1

</llo_original>
